<compile_context>
chip_gen: v5e
topology: v5e:2x2
jax: 0.10.0
libtpu: 0.0.40
codegen_flags: <defaults>
</compile_context>

<pallas_src>
import functools

import jax
import jax.numpy as jnp
from jax.experimental import pallas as pl
from jax.experimental.pallas import tpu as pltpu


def _cdiv(a: int, b: int) -> int:
    return -(-a // b)


def _round_up(x: int, m: int) -> int:
    return ((x + m - 1) // m) * m


def _num_tensorcores() -> int:
    """Best-effort TensorCores-per-device (v7x / megacore -> 2). Falls back to 1."""
    try:
        info = pltpu.get_tpu_info()
        for attr in ("num_cores", "core_count", "num_tensorcores", "tensorcores_per_chip"):
            v = getattr(info, attr, None)
            if isinstance(v, int) and v > 0:
                return min(int(v), 8)
    except Exception:
        pass
    try:
        v = getattr(jax.devices()[0], "num_cores", None)
        if isinstance(v, int) and v > 0:
            return min(int(v), 8)
    except Exception:
        pass
    return 1


def _contrastive_loss_kernel(d_ref, y_ref, out_ref, acc_ref, *,
                             margin: float, scale: float, lane: int,
                             block_rows: int, steps_per_core: int,
                             n_valid: int, needs_mask: bool):
    i = pl.program_id(1)

    @pl.when(i == 0)
    def _init():
        acc_ref[...] = jnp.zeros_like(acc_ref)

    d = d_ref[...].astype(jnp.float32)
    y = y_ref[...].astype(jnp.float32)

    h = jnp.maximum(jnp.float32(margin) - d, 0.0)
    hh = h * h
    # y*d^2 + (1-y)*h^2  ==  h^2 + y*(d^2 - h^2)   (exact, one fewer VALU op)
    loss = hh + y * (d * d - hh)

    def _fold(x):
        # (block_rows, lane) -> (8, lane): layout-preserving reshape + adds of
        # whole vregs (no XLU); keeps the resident accumulator tiny.
        return x.reshape(block_rows // 8, 8, lane).sum(axis=0)

    if needs_mask:
        c = pl.program_id(0)
        blk_elems = block_rows * lane
        base = (c * steps_per_core + i) * blk_elems   # global flat offset of this block
        rem = n_valid - base                          # valid elements from `base` onward

        @pl.when(rem >= blk_elems)                    # interior block: no mask cost
        def _full():
            acc_ref[...] += _fold(loss)

        @pl.when(rem < blk_elems)                     # ragged / fully-OOB tail block
        def _tail():
            rows_iota = jax.lax.broadcasted_iota(jnp.int32, (block_rows, lane), 0)
            cols_iota = jax.lax.broadcasted_iota(jnp.int32, (block_rows, lane), 1)
            flat = rows_iota * lane + cols_iota
            acc_ref[...] += _fold(jnp.where(flat < rem, loss, 0.0))
    else:
        acc_ref[...] += _fold(loss)

    @pl.when(i == steps_per_core - 1)
    def _finalize():
        total = jnp.sum(acc_ref[...]) * jnp.float32(scale)
        out_ref[...] = jnp.full(out_ref.shape, total, dtype=out_ref.dtype)


def contrastive_loss(distances: jax.Array, labels: jax.Array, margin: float = 1.0,
                     *, block_rows: int | None = None, lane: int | None = None,
                     num_partials: int | None = None) -> jax.Array:
    """Scalar f32 loss matching torch ContrastiveLoss(margin).forward(...)."""
    assert distances.shape == labels.shape, "distances and labels must have the same shape"
    n = int(distances.size)
    assert n > 0

    if num_partials is None:
        num_partials = _num_tensorcores()
    num_partials = max(1, int(num_partials))

    # ---- pick a lane-dense 2-D view; zero-copy entry when the shape allows ----
    shape = distances.shape
    if lane is None:
        if len(shape) >= 1 and shape[-1] % 128 == 0 and 128 <= shape[-1] <= 4096:
            lane = int(shape[-1])               # tile the native last dim: no data movement
        else:
            lane = 1024 if n >= (1 << 20) else 128
    lane = max(128, _round_up(int(lane), 128))

    rows = _cdiv(n, lane)
    pad = rows * lane - n
    if pad == 0:
        d2 = distances.reshape(rows, lane)
        y2 = labels.reshape(rows, lane)
    else:
        # Minimal pad (< lane elements). Padded contents are ignored: the kernel
        # masks the tail against the true element count.
        d2 = jnp.pad(distances.reshape(-1), (0, pad)).reshape(rows, lane)
        y2 = jnp.pad(labels.reshape(-1), (0, pad)).reshape(rows, lane)

    # ---- tile sizes: ~4 MiB (f32) per input block, capped at one core's share ----
    if block_rows is None:
        target_elems = 1 << 20
        block_rows = max(8, (target_elems // lane) // 8 * 8)
    block_rows = max(8, _round_up(int(block_rows), 8))
    block_rows = min(block_rows, _round_up(_cdiv(rows, num_partials), 8))

    nblocks = _cdiv(rows, block_rows)
    steps_per_core = _cdiv(nblocks, num_partials)
    grid = (num_partials, steps_per_core)

    # Any block may contain invalid (OOB / padded) elements?
    needs_mask = (num_partials * steps_per_core * block_rows * lane) > n

    def in_idx(c, i):
        b = c * steps_per_core + i
        # Clamp fully-OOB blocks to a valid block; their contribution is masked to 0.
        return (jnp.minimum(b, nblocks - 1), 0)

    kernel = functools.partial(
        _contrastive_loss_kernel,
        margin=float(margin), scale=0.5 / float(n),
        lane=lane, block_rows=block_rows, steps_per_core=steps_per_core,
        n_valid=n, needs_mask=needs_mask)

    out = pl.pallas_call(
        kernel,
        out_shape=jax.ShapeDtypeStruct((num_partials, 8, 128), jnp.float32),
        grid=grid,
        in_specs=[
            pl.BlockSpec((block_rows, lane), in_idx),
            pl.BlockSpec((block_rows, lane), in_idx),
        ],
        # One lane-dense (1,8,128) output block per partial: no cross-core clobber,
        # unmasked full-vreg store, written once in the per-core epilogue.
        out_specs=pl.BlockSpec((1, 8, 128), lambda c, i: (c, 0, 0)),
        scratch_shapes=[pltpu.VMEM((8, lane), jnp.float32)],
        compiler_params=pltpu.CompilerParams(
            dimension_semantics=("parallel", "arbitrary"),
            vmem_limit_bytes=32 * 1024 * 1024),
        cost_estimate=pl.CostEstimate(
            flops=8 * n,
            transcendentals=0,
            bytes_accessed=int(distances.nbytes) + int(labels.nbytes)
            + num_partials * 8 * 128 * 4),
    )(d2, y2)

    return jnp.sum(out[:, 0, 0])


def _reference(distances, labels, margin=1.0):
    d = distances.astype(jnp.float32)
    y = labels.astype(jnp.float32)
    loss_similar = y * d ** 2
    loss_dissimilar = (1.0 - y) * jnp.maximum(margin - d, 0.0) ** 2
    return jnp.mean(0.5 * (loss_similar + loss_dissimilar))


if __name__ == "__main__":
    key = jax.random.PRNGKey(0)
    kd, kl, kd2, kl2, kd3, kl3 = jax.random.split(key, 6)
    margin = 1.0

    # 1) Small (8, 16): generic layout path, single partial-covered block -> in-kernel tail mask.
    distances = jax.random.uniform(kd, (8, 16), dtype=jnp.float32, minval=0.0, maxval=2.0)
    labels = (jax.random.uniform(kl, (8, 16)) > 0.5).astype(jnp.float32)
    loss = jax.block_until_ready(contrastive_loss(distances, labels, margin=margin))
    ref = _reference(distances, labels, margin=margin)
    assert jnp.allclose(loss, ref, rtol=1e-5, atol=1e-6), (loss, ref)

    # 2) (64, 256): zero-copy native-lane path, explicit 2-way partial split +
    #    small blocks to exercise the multi-step resident accumulator (grid = (2, 4)).
    d_big = jax.random.uniform(kd2, (64, 256), dtype=jnp.float32, minval=0.0, maxval=2.0)
    y_big = (jax.random.uniform(kl2, (64, 256)) > 0.5).astype(jnp.float32)
    loss2 = jax.block_until_ready(
        contrastive_loss(d_big, y_big, margin=margin, block_rows=8, num_partials=2))
    ref2 = _reference(d_big, y_big, margin=margin)
    assert jnp.allclose(loss2, ref2, rtol=1e-5, atol=1e-6), (loss2, ref2)

    # 3) Narrow dtypes (bf16 distances, int8 labels): DMA'd narrow, upcast in-kernel.
    d_bf16 = d_big.astype(jnp.bfloat16)
    y_i8 = y_big.astype(jnp.int8)
    loss3 = jax.block_until_ready(contrastive_loss(d_bf16, y_i8, margin=margin))
    ref3 = _reference(d_bf16, y_i8, margin=margin)
    assert jnp.allclose(loss3, ref3, rtol=1e-5, atol=1e-6), (loss3, ref3)

    # 4) Ragged size (3, 300) -> n=900 not a multiple of 128: minimal-pad path + tail mask.
    d_rag = jax.random.uniform(kd3, (3, 300), dtype=jnp.float32, minval=0.0, maxval=2.0)
    y_rag = (jax.random.uniform(kl3, (3, 300)) > 0.5).astype(jnp.float32)
    loss4 = jax.block_until_ready(contrastive_loss(d_rag, y_rag, margin=margin))
    ref4 = _reference(d_rag, y_rag, margin=margin)
    assert jnp.allclose(loss4, ref4, rtol=1e-5, atol=1e-6), (loss4, ref4)

    print("KERNEL_OK")
</pallas_src>

<mosaic_0001>
module attributes {stable_mosaic.version = 11 : i64} {
  func.func @_contrastive_loss_kernel(%arg0: i32, %arg1: i32, %arg2: memref<8x128xf32, #tpu.memory_space<vmem>>, %arg3: memref<8x128xf32, #tpu.memory_space<vmem>>, %arg4: memref<1x8x128xf32, #tpu.memory_space<vmem>>, %arg5: memref<8x128xf32, #tpu.memory_space<vmem>>) attributes {dimension_semantics = [#tpu.dimension_semantics<parallel>, #tpu.dimension_semantics<arbitrary>], iteration_bounds = array<i64: 1, 1>, scalar_prefetch = 0 : i64, scratch_operands = 1 : i64, tpu.core_type = #tpu.core_type<tc>, window_params = [{transform_indices = @transform_0, window_bounds = array<i64: 8, 128>}, {transform_indices = @transform_1, window_bounds = array<i64: 8, 128>}, {transform_indices = @transform_2, window_bounds = array<i64: 1, 8, 128>}]} {
    %c0_i32 = arith.constant 0 : i32
    %0 = arith.cmpi eq, %arg1, %c0_i32 : i32
    %1 = arith.extui %0 : i1 to i32
    %c0_i32_0 = arith.constant 0 : i32
    %2 = arith.cmpi ne, %1, %c0_i32_0 : i32
    scf.if %2 {
      %cst_11 = arith.constant 0.000000e+00 : f32
      %27 = vector.broadcast %cst_11 : f32 to vector<8x128xf32>
      %c0_12 = arith.constant 0 : index
      %c0_13 = arith.constant 0 : index
      %28 = vector.load %arg5[%c0_12, %c0_13] : memref<8x128xf32, #tpu.memory_space<vmem>>, vector<8x128xf32>
      tpu.vector_store %arg5[%c0_12, %c0_13], %27 {strides = array<i32>} : memref<8x128xf32, #tpu.memory_space<vmem>>, vector<8x128xf32>,
    } else {
    }
    %c0 = arith.constant 0 : index
    %c0_1 = arith.constant 0 : index
    %3 = vector.load %arg2[%c0, %c0_1] : memref<8x128xf32, #tpu.memory_space<vmem>>, vector<8x128xf32>
    %c0_2 = arith.constant 0 : index
    %c0_3 = arith.constant 0 : index
    %4 = vector.load %arg3[%c0_2, %c0_3] : memref<8x128xf32, #tpu.memory_space<vmem>>, vector<8x128xf32>
    %cst = arith.constant 1.000000e+00 : f32
    %5 = vector.broadcast %cst : f32 to vector<8x128xf32>
    %6 = arith.subf %5, %3 : vector<8x128xf32>
    %cst_4 = arith.constant 0.000000e+00 : f32
    %7 = vector.broadcast %cst_4 : f32 to vector<8x128xf32>
    %8 = arith.maximumf %6, %7 : vector<8x128xf32>
    %9 = arith.mulf %8, %8 : vector<8x128xf32>
    %10 = arith.mulf %3, %3 : vector<8x128xf32>
    %11 = arith.subf %10, %9 : vector<8x128xf32>
    %12 = arith.mulf %4, %11 : vector<8x128xf32>
    %13 = arith.addf %9, %12 : vector<8x128xf32>
    %c1_i32 = arith.constant 1 : i32
    %14 = arith.muli %arg0, %c1_i32 : i32
    %15 = arith.addi %14, %arg1 : i32
    %c1024_i32 = arith.constant 1024 : i32
    %16 = arith.muli %15, %c1024_i32 : i32
    %c128_i32 = arith.constant 128 : i32
    %17 = arith.subi %c128_i32, %16 : i32
    %c1024_i32_5 = arith.constant 1024 : i32
    %18 = arith.cmpi sge, %17, %c1024_i32_5 : i32
    %19 = arith.extui %18 : i1 to i32
    %c0_i32_6 = arith.constant 0 : i32
    %20 = arith.cmpi ne, %19, %c0_i32_6 : i32
    scf.if %20 {
      %c0_11 = arith.constant 0 : index
      %c0_12 = arith.constant 0 : index
      %27 = vector.load %arg5[%c0_11, %c0_12] : memref<8x128xf32, #tpu.memory_space<vmem>>, vector<8x128xf32>
      %28 = vector.shape_cast %13 : vector<8x128xf32> to vector<1x8x128xf32>
      %cst_13 = arith.constant dense<0.000000e+00> : vector<8x128xf32>
      %29 = vector.multi_reduction <add>, %28, %cst_13 [0] : vector<1x8x128xf32> to vector<8x128xf32>
      %30 = arith.addf %27, %29 : vector<8x128xf32>
      %c0_14 = arith.constant 0 : index
      %c0_15 = arith.constant 0 : index
      %31 = vector.load %arg5[%c0_14, %c0_15] : memref<8x128xf32, #tpu.memory_space<vmem>>, vector<8x128xf32>
      tpu.vector_store %arg5[%c0_14, %c0_15], %30 {strides = array<i32>} : memref<8x128xf32, #tpu.memory_space<vmem>>, vector<8x128xf32>,
    } else {
    }
    %c1024_i32_7 = arith.constant 1024 : i32
    %21 = arith.cmpi slt, %17, %c1024_i32_7 : i32
    %22 = arith.extui %21 : i1 to i32
    %c0_i32_8 = arith.constant 0 : i32
    %23 = arith.cmpi ne, %22, %c0_i32_8 : i32
    scf.if %23 {
      %27 = tpu.iota {dimensions = array<i32: 0>} : vector<8x128xi32>
      %28 = tpu.iota {dimensions = array<i32: 1>} : vector<8x128xi32>
      %c128_i32_11 = arith.constant 128 : i32
      %29 = vector.broadcast %c128_i32_11 : i32 to vector<8x128xi32>
      %30 = arith.muli %27, %29 : vector<8x128xi32>
      %31 = arith.addi %30, %28 : vector<8x128xi32>
      %c0_12 = arith.constant 0 : index
      %c0_13 = arith.constant 0 : index
      %32 = vector.load %arg5[%c0_12, %c0_13] : memref<8x128xf32, #tpu.memory_space<vmem>>, vector<8x128xf32>
      %33 = vector.broadcast %17 : i32 to vector<8x128xi32>
      %34 = arith.cmpi slt, %31, %33 : vector<8x128xi32>
      %cst_14 = arith.constant 0.000000e+00 : f32
      %35 = vector.broadcast %cst_14 : f32 to vector<8x128xf32>
      %36 = arith.select %34, %13, %35 : vector<8x128xi1>, vector<8x128xf32>
      %37 = vector.shape_cast %36 : vector<8x128xf32> to vector<1x8x128xf32>
      %cst_15 = arith.constant dense<0.000000e+00> : vector<8x128xf32>
      %38 = vector.multi_reduction <add>, %37, %cst_15 [0] : vector<1x8x128xf32> to vector<8x128xf32>
      %39 = arith.addf %32, %38 : vector<8x128xf32>
      %c0_16 = arith.constant 0 : index
      %c0_17 = arith.constant 0 : index
      %40 = vector.load %arg5[%c0_16, %c0_17] : memref<8x128xf32, #tpu.memory_space<vmem>>, vector<8x128xf32>
      tpu.vector_store %arg5[%c0_16, %c0_17], %39 {strides = array<i32>} : memref<8x128xf32, #tpu.memory_space<vmem>>, vector<8x128xf32>,
    } else {
    }
    %c0_i32_9 = arith.constant 0 : i32
    %24 = arith.cmpi eq, %arg1, %c0_i32_9 : i32
    %25 = arith.extui %24 : i1 to i32
    %c0_i32_10 = arith.constant 0 : i32
    %26 = arith.cmpi ne, %25, %c0_i32_10 : i32
    scf.if %26 {
      %c0_11 = arith.constant 0 : index
      %c0_12 = arith.constant 0 : index
      %27 = vector.load %arg5[%c0_11, %c0_12] : memref<8x128xf32, #tpu.memory_space<vmem>>, vector<8x128xf32>
      %28 = vector.shape_cast %27 : vector<8x128xf32> to vector<1x8x128xf32>
      %cst_13 = arith.constant dense<0.000000e+00> : vector<1xf32>
      %29 = vector.multi_reduction <add>, %28, %cst_13 [1, 2] : vector<1x8x128xf32> to vector<1xf32>
      %30 = vector.shape_cast %29 : vector<1xf32> to vector<1x1x1xf32>
      %31 = vector.extract %30[0, 0, 0] : f32 from vector<1x1x1xf32>
      %cst_14 = arith.constant 3.906250e-03 : f32
      %32 = arith.mulf %31, %cst_14 : f32
      %33 = vector.broadcast %32 : f32 to vector<1x8x128xf32>
      %c0_15 = arith.constant 0 : index
      %c0_16 = arith.constant 0 : index
      %c0_17 = arith.constant 0 : index
      %34 = vector.load %arg4[%c0_15, %c0_16, %c0_17] : memref<1x8x128xf32, #tpu.memory_space<vmem>>, vector<1x8x128xf32>
      tpu.vector_store %arg4[%c0_15, %c0_16, %c0_17], %33 {strides = array<i32>} : memref<1x8x128xf32, #tpu.memory_space<vmem>>, vector<1x8x128xf32>,
    } else {
    }
    return
  }
  func.func @transform_0(%arg0: i32, %arg1: i32) -> (i32, i32) {
    %c1_i32 = arith.constant 1 : i32
    %0 = arith.muli %arg0, %c1_i32 : i32
    %1 = arith.addi %0, %arg1 : i32
    %c0_i32 = arith.constant 0 : i32
    %2 = arith.minsi %1, %c0_i32 : i32
    %c0_i32_0 = arith.constant 0 : i32
    %c0_i32_1 = arith.constant 0 : i32
    return %2, %c0_i32_0 : i32, i32
  }
  func.func @transform_1(%arg0: i32, %arg1: i32) -> (i32, i32) {
    %c1_i32 = arith.constant 1 : i32
    %0 = arith.muli %arg0, %c1_i32 : i32
    %1 = arith.addi %0, %arg1 : i32
    %c0_i32 = arith.constant 0 : i32
    %2 = arith.minsi %1, %c0_i32 : i32
    %c0_i32_0 = arith.constant 0 : i32
    %c0_i32_1 = arith.constant 0 : i32
    return %2, %c0_i32_0 : i32, i32
  }
  func.func @transform_2(%arg0: i32, %arg1: i32) -> (i32, i32, i32) {
    %c0_i32 = arith.constant 0 : i32
    %c0_i32_0 = arith.constant 0 : i32
    %c0_i32_1 = arith.constant 0 : i32
    return %arg0, %c0_i32, %c0_i32_0 : i32, i32, i32
  }
}

</mosaic_0001>

<llo_original>
// kernel: tpu_custom_call.1
$region0: #{tpu_custom_call.1}
  #allocation0 [shape = 'u32[]', space=smem, size = 0x4, offset = 0x4, fixed_abs, tag = 'smem constant byte address 0x4 - core index']
  #allocation1 [shape = 'u32[72,128]{1,0:T(1,128)}', space=vmem, size = 0x9000, scoped, tag = 'internal scratch']
  #allocation2 [shape = 'f32[8,128]{1,0:T(8,128)}', space=vmem, size = 0x1000, scoped, tag = 'scratch operand']
  %s0 = inlined_call_operand.hbm [shape: f32[1,128], index: 0, kind: input, shape index: {}]
  %s1 = inlined_call_operand.hbm [shape: f32[1,128], index: 1, kind: input, shape index: {}]
  %s2 = inlined_call_operand.hbm [shape: f32[1,8,128], index: 2, kind: output, shape index: {}]
  %s3 = sld [smem:[#allocation0]]
  $region42: #{tpu_custom_call.1} parent=0
    _
  %s5 = ssub.s32 1, %s3
  %s6 = scalar_select 0, %s5, %s3
  $region1: #{tpu_custom_call.1} parent=0
    #allocation3 [shape = 'u8[4096]{0}', space=vmem, size = 0x1000, scoped, tag = 'input window, operand 0, single buffered']
    #allocation4 [shape = 's32[1]{0}', space=sflag, size = 0x4, scoped, tag = 'scoped memory for tpu_custom_call.1']
    #allocation5 [shape = 's32[1]{0}', space=sflag, size = 0x4, scoped, tag = 'scoped memory for tpu_custom_call.1']
    #allocation6 [shape = 'u8[4096]{0}', space=vmem, size = 0x1000, scoped, tag = 'input window, operand 1, single buffered']
    #allocation7 [shape = 's32[1]{0}', space=sflag, size = 0x4, scoped, tag = 'scoped memory for tpu_custom_call.1']
    #allocation8 [shape = 'u8[4096]{0}', space=vmem, size = 0x1000, scoped, tag = 'output window, operand 0, single buffered']
    %7 = vsyncpa [#allocation4], 0
    %8 = vsyncpa [#allocation7], 0
    %9 = vsyncpa [#allocation5], 0
    // Predicated region
    $region2: #{tpu_custom_call.1} parent=1 // pred_check
      _
    $region3: #{tpu_custom_call.1} parent=1 // pred_check_branch
      %11 = sbr.rel (0) target = $region5
    $region4: #{tpu_custom_call.1} parent=1 // pred_region
      %s12 = sadd.s32 0, 0
      %p13 = scmp.lt.s32.totalorder %s12, 0
      %s14 = scalar_select %p13, %s12, 0
      %s15 = smul.u32 8, %s14
      %s16 = ssub.s32 1, %s15
      %s17 = ssub.s32 8, %s16
      %s18 = sshll.u32 %s17, 4
      %19 = vsyncadd [#allocation4], %s18
      %p20 = scmp.ne.s32.totalorder 0, %s16
      %s21 = scalar_lea.hbm %s0, %s15
      %s22 = sshll.u32 %s21, 4
      %s23 = int_to_ptr.hbm [resolvable:$true] %s22
      %s24 = sshll.u32 [#allocation3], 4
      %s25 = int_to_ptr.vmem [resolvable:$true] %s24
      %s26 = sshll.u32 %s16, 4
      %30 = dma.hbm_to_vmem [thread:$0]  (%p20), %s23, %s26, %s25, [#allocation4], 16, 16, 1
    $region5: #{tpu_custom_call.1} parent=1 // pred_fallthru
      _
    // Predicated region
    $region6: #{tpu_custom_call.1} parent=1 // pred_check
      _
    $region7: #{tpu_custom_call.1} parent=1 // pred_check_branch
      %32 = sbr.rel (0) target = $region9
    $region8: #{tpu_custom_call.1} parent=1 // pred_region
      %s33 = sadd.s32 0, 0
      %p34 = scmp.lt.s32.totalorder %s33, 0
      %s35 = scalar_select %p34, %s33, 0
      %s36 = smul.u32 8, %s35
      %s37 = ssub.s32 1, %s36
      %s38 = ssub.s32 8, %s37
      %s39 = sshll.u32 %s38, 4
      %40 = vsyncadd [#allocation7], %s39
      %p41 = scmp.ne.s32.totalorder 0, %s37
      %s42 = scalar_lea.hbm %s1, %s36
      %s43 = sshll.u32 %s42, 4
      %s44 = int_to_ptr.hbm [resolvable:$true] %s43
      %s45 = sshll.u32 [#allocation6], 4
      %s46 = int_to_ptr.vmem [resolvable:$true] %s45
      %s47 = sshll.u32 %s37, 4
      %51 = dma.hbm_to_vmem [thread:$0]  (%p41), %s44, %s47, %s46, [#allocation7], 16, 16, 1
    $region9: #{tpu_custom_call.1} parent=1 // pred_fallthru
      _
    // Predicated region
    $region10: #{tpu_custom_call.1} parent=1 // pred_check
      _
    $region11: #{tpu_custom_call.1} parent=1 // pred_check_branch
      %53 = sbr.rel (0) target = $region13
    $region12: #{tpu_custom_call.1} parent=1 // pred_region
      %55 = dma.done [#allocation4], 128
    $region13: #{tpu_custom_call.1} parent=1 // pred_fallthru
      _
    // Predicated region
    $region14: #{tpu_custom_call.1} parent=1 // pred_check
      _
    $region15: #{tpu_custom_call.1} parent=1 // pred_check_branch
      %57 = sbr.rel (0) target = $region17
    $region16: #{tpu_custom_call.1} parent=1 // pred_region
      %59 = dma.done [#allocation7], 128
    $region17: #{tpu_custom_call.1} parent=1 // pred_fallthru
      _
    %s60 = sadd.s32 0, 0
    %p61 = scmp.lt.s32.totalorder %s60, 0
    %s62 = scalar_select %p61, %s60, 0
    %s63 = smul.u32 8, %s62
    %s64 = ssub.s32 1, %s63
    %s65 = sadd.s32 0, 0
    %p66 = scmp.lt.s32.totalorder %s65, 0
    %s67 = scalar_select %p66, %s65, 0
    %s68 = smul.u32 8, %s67
    %s69 = ssub.s32 1, %s68
    %p70 = scmp.eq.s32.totalorder 0, 0
    // Predicated region
    $region18: #{tpu_custom_call.1} parent=1 // pred_check
      %p71 = pneg %p70
    $region19: #{tpu_custom_call.1} parent=1 // pred_check_branch
      %73 = sbr.rel (%p71) target = $region21
    $region20: #{tpu_custom_call.1} parent=1 // pred_region
      %74 = vst [vmem:[#allocation2] sm:$0xff] 0.0
    $region21: #{tpu_custom_call.1} parent=1 // pred_fallthru
      _
    %v75 = vld [vmem:[#allocation3] sm:$0xff]
    %v76 = vld [vmem:[#allocation6] sm:$0xff]
    %v77 = vsub.f32 1.0, %v75
    %v78 = vmax.f32 %v77, 0.0
    %v79 = vmul.f32 %v78, %v78
    %v80 = vmul.f32 %v75, %v75
    %v81 = vsub.f32 %v80, %v79
    %v82 = vmul.f32 %v76, %v81
    %v83 = vadd.f32 %v79, %v82
    %s84 = sadd.s32 0, 0
    %s85 = smul.u32 %s84, 1024
    %s86 = ssub.s32 128, %s85
    %p87 = scmp.ge.s32.totalorder %s86, 1024
    // Predicated region
    $region22: #{tpu_custom_call.1} parent=1 // pred_check
      %p88 = pneg %p87
    $region23: #{tpu_custom_call.1} parent=1 // pred_check_branch
      %90 = sbr.rel (%p88) target = $region25
    $region24: #{tpu_custom_call.1} parent=1 // pred_region
      %v91 = vld [vmem:[#allocation2] sm:$0xff]
      %v92 = vadd.f32 %v83, 0.0
      %v93 = vadd.f32 %v91, %v92
      %94 = vst [vmem:[#allocation2] sm:$0xff] %v93
    $region25: #{tpu_custom_call.1} parent=1 // pred_fallthru
      _
    %p95 = scmp.lt.s32.totalorder %s86, 1024
    // Predicated region
    $region26: #{tpu_custom_call.1} parent=1 // pred_check
      %p96 = pneg %p95
    $region27: #{tpu_custom_call.1} parent=1 // pred_check_branch
      %98 = sbr.rel (%p96) target = $region29
    $region28: #{tpu_custom_call.1} parent=1 // pred_region
      %v99 = vlaneseq
      %v100 = vshrl.u32 %v99, 7
      %v101 = vlaneseq
      %v102 = vand.u32 %v101, 127
      %v103 = vmul.u32 %v100, 128
      %v104 = vadd.s32 %v103, %v102
      %v105 = vld [vmem:[#allocation2] sm:$0xff]
      %v106 = vstv %s86
      %vm107 = vcmp.lt.s32.totalorder %v104, %v106
      %v108 = vsel %vm107, %v83, 0.0
      %v109 = vadd.f32 %v108, 0.0
      %v110 = vadd.f32 %v105, %v109
      %111 = vst [vmem:[#allocation2] sm:$0xff] %v110
    $region29: #{tpu_custom_call.1} parent=1 // pred_fallthru
      _
    // Predicated region
    $region30: #{tpu_custom_call.1} parent=1 // pred_check
      %p112 = pneg %p70
    $region31: #{tpu_custom_call.1} parent=1 // pred_check_branch
      %114 = sbr.rel (%p112) target = $region33
    $region32: #{tpu_custom_call.1} parent=1 // pred_region
      %v115 = vld [vmem:[#allocation2] sm:$0xff]
      %116 = vadd.xlane.f32.xlu0 %v115
      %v117 = vpop.xlane.xlu0 %116
      %v118 = vrot.slane %v117, 4
      %v119 = vadd.f32 %v117, %v118
      %v120 = vrot.slane %v119, 2
      %v121 = vadd.f32 %v119, %v120
      %v122 = vrot.slane %v121, 1
      %v123 = vadd.f32 %v121, %v122
      %s124 = vtos %v123
      %s125 = smul.f32 %s124, 0.00390625
      %v126 = vstv %s125
      %127 = vst [vmem:[#allocation8] sm:$0xff] %v126
    $region33: #{tpu_custom_call.1} parent=1 // pred_fallthru
      _
    // Predicated region
    $region34: #{tpu_custom_call.1} parent=1 // pred_check
      _
    $region35: #{tpu_custom_call.1} parent=1 // pred_check_branch
      %129 = sbr.rel (0) target = $region37
    $region36: #{tpu_custom_call.1} parent=1 // pred_region
      %131 = vsyncadd [#allocation5], 0
      %s133 = sshll.u32 [#allocation8], 4
      %s134 = int_to_ptr.vmem [resolvable:$true] %s133
      %s135 = sshll.u32 %s2, 4
      %s136 = int_to_ptr.hbm [resolvable:$true] %s135
      %138 = dma.vmem_to_hbm [thread:$0]  %s134, 128, %s136, [#allocation5]
    $region37: #{tpu_custom_call.1} parent=1 // pred_fallthru
      _
    // Predicated region
    $region38: #{tpu_custom_call.1} parent=1 // pred_check
      _
    $region39: #{tpu_custom_call.1} parent=1 // pred_check_branch
      %140 = sbr.rel (0) target = $region41
    $region40: #{tpu_custom_call.1} parent=1 // pred_region
      %142 = dma.done [#allocation5], 128
    $region41: #{tpu_custom_call.1} parent=1 // pred_fallthru
      _
    %143 = vsyncpa [#allocation4], 1
    %144 = vsyncpa [#allocation7], 1
    %145 = vsyncpa [#allocation5], 1

</llo_original>
